<compile_context>
chip_gen: v5e
topology: v5e:2x2
jax: 0.10.0
libtpu: 0.0.40
codegen_flags: <defaults>
</compile_context>

<pallas_src>
import functools

import jax
import jax.numpy as jnp
from jax.experimental import pallas as pl
from jax.experimental.pallas import tpu as pltpu


# Inputs smaller than this skip Pallas entirely: launch cost + ~0.35 us per
# grid step dominates tiny tensors; XLA's fused broadcast multiply wins there.
_PALLAS_MIN_BYTES = 2 * 1024 * 1024


def _sublane_rows(dtype):
    """Minimum sublane tile for this dtype: 8 (f32), 16 (bf16), 32 (int8/fp8)."""
    return max(8, 32 // jnp.dtype(dtype).itemsize)


def _tiling_config():
    """Return (target_tile_bytes, vmem_limit_bytes) per TPU generation."""
    try:
        vmem = int(pltpu.get_tpu_info().vmem_capacity_bytes)
    except Exception:
        # Unknown hardware: conservative 2 MiB tiles, default scoped VMEM.
        return 2 * 1024 * 1024, None
    if vmem <= 96 * 1024 * 1024:
        # v7x: 64 MiB physical VMEM per TensorCore. 4 MiB tiles keep the
        # pipelined footprint (2x in + 2x out + resident mask) under ~20 MiB.
        return 4 * 1024 * 1024, 28 * 1024 * 1024
    # v5e / v6e: 128 MiB physical VMEM. Raise the scoped limit explicitly so
    # 4 MiB double-buffered tiles never trip the 16/32 MiB defaults.
    return 4 * 1024 * 1024, 64 * 1024 * 1024


def _compiler_params(vmem_limit):
    kw = dict(dimension_semantics=("parallel", "parallel"))
    if vmem_limit is not None:
        kw["vmem_limit_bytes"] = vmem_limit
    return pltpu.CompilerParams(**kw)


def _broadcast_mul_kernel(x_ref, m_ref, o_ref):
    # Single broadcast multiply on the VPU; the kernel is purely HBM-bound.
    o_ref[...] = x_ref[...] * m_ref[...]


def _mask_channel_pallas_3d(x3, m3, target_override=None):
    """x3: (N, C, HW) with HW % 128 == 0; m3: (1, C, 1). Returns x3 * m3."""
    N, C, HW = x3.shape
    itemsize = x3.dtype.itemsize
    target, vmem_limit = _tiling_config()
    if target_override is not None:
        target = target_override

    # Lane block over HW (multiple of 128, or the full extent).
    plane_bytes = C * HW * itemsize
    if HW <= 128 or plane_bytes <= target:
        hw_blk = HW
    else:
        hw_blk = max(128, (target // (C * itemsize * 128)) * 128)
        hw_blk = min(hw_blk, (HW // 128) * 128)
    # Batch block: as many (C, hw_blk) planes as fit the byte target.
    n_blk = int(min(N, max(1, target // (C * hw_blk * itemsize))))
    # Whenever the tensor is larger than one tile this yields >= 2 blocks on a
    # "parallel" axis, so v7x's second TensorCore participates.
    grid = (pl.cdiv(N, n_blk), pl.cdiv(HW, hw_blk))

    return pl.pallas_call(
        _broadcast_mul_kernel,
        out_shape=jax.ShapeDtypeStruct((N, C, HW), x3.dtype),
        grid=grid,
        in_specs=[
            pl.BlockSpec((n_blk, C, hw_blk), lambda i, j: (i, 0, j)),
            # Full mask block with a constant index map: DMA'd once, stays
            # resident in VMEM across the whole grid (no per-step refetch and
            # no lane-padded (rows, 1) stripes).
            pl.BlockSpec((1, C, 1), lambda i, j: (0, 0, 0)),
        ],
        out_specs=pl.BlockSpec((n_blk, C, hw_blk), lambda i, j: (i, 0, j)),
        compiler_params=_compiler_params(vmem_limit),
    )(x3, m3)


def _mask_col_pallas(x2, m_row, target_override=None):
    """x2: (R, L); m_row: (1, L). Returns x2 * m_row (per-column scale)."""
    R, L = x2.shape
    itemsize = x2.dtype.itemsize
    target, vmem_limit = _tiling_config()
    if target_override is not None:
        target = target_override
    sub = _sublane_rows(x2.dtype)

    # Lane block: full extent when a sub-row stripe fits the target, otherwise
    # the largest multiple of 128 that does.
    if L <= 128 or sub * L * itemsize <= target:
        l_blk = L
    else:
        l_blk = max(128, (target // (sub * itemsize * 128)) * 128)
        l_blk = min(l_blk, (L // 128) * 128)
    # Row block: as many rows as fit, rounded to the dtype's sublane tile.
    rows_fit = max(1, target // (l_blk * itemsize))
    if rows_fit >= R:
        r_blk = R
    else:
        r_blk = int(min(R, max(sub, (rows_fit // sub) * sub)))

    # Lane axis is the OUTER grid dim: the (1, l_blk) mask stripe's block index
    # is constant across the inner row loop, so Pallas only re-fetches it when
    # the lane block changes instead of every step.
    grid = (pl.cdiv(L, l_blk), pl.cdiv(R, r_blk))

    return pl.pallas_call(
        _broadcast_mul_kernel,
        out_shape=jax.ShapeDtypeStruct((R, L), x2.dtype),
        grid=grid,
        in_specs=[
            pl.BlockSpec((r_blk, l_blk), lambda j, i: (i, j)),
            pl.BlockSpec((1, l_blk), lambda j, i: (0, j)),
        ],
        out_specs=pl.BlockSpec((r_blk, l_blk), lambda j, i: (i, j)),
        compiler_params=_compiler_params(vmem_limit),
    )(x2, m_row)


@functools.partial(jax.jit, static_argnames=("force_pallas", "target_tile_bytes"))
def mask_layer_forward_conv(x, mask, *, force_pallas=False, target_tile_bytes=None):
    """x: (N, C, H, W), mask: (1, C, 1, 1). Returns x * mask (broadcast)."""
    N, C, H, W = x.shape
    m = mask.astype(x.dtype)
    if not force_pallas and x.size * x.dtype.itemsize < _PALLAS_MIN_BYTES:
        # Tiny tensors: plain XLA fused broadcast-mul is strictly faster.
        return x * m
    HW = H * W
    if HW % 128 == 0:
        # Lane-dense 3-D view: last block dim is a multiple of 128 -> full-width
        # unmasked vector stores; mask stays at its natural (1, C, 1), resident.
        out = _mask_channel_pallas_3d(
            x.reshape(N, C, HW), m.reshape(1, C, 1), target_tile_bytes)
        return out.reshape(N, C, H, W)
    # HW not lane-aligned (14x14, 7x7, ...): a (..., HW) block would waste up to
    # ~60% of lanes on masked stores. Flatten to one long (N, C*HW) row per
    # sample and expand the channel mask to a per-column row once (cheap).
    x2 = x.reshape(N, C * HW)
    m_row = jnp.broadcast_to(m.reshape(1, C, 1), (1, C, HW)).reshape(1, C * HW)
    return _mask_col_pallas(x2, m_row, target_tile_bytes).reshape(N, C, H, W)


@functools.partial(jax.jit, static_argnames=("force_pallas", "target_tile_bytes"))
def mask_layer_forward_dense(x, mask, *, force_pallas=False, target_tile_bytes=None):
    """x: (N, F), mask: (1, F). Returns x * mask (broadcast)."""
    N, F = x.shape
    m = mask.astype(x.dtype).reshape(1, F)
    if not force_pallas and x.size * x.dtype.itemsize < _PALLAS_MIN_BYTES:
        return x * m
    return _mask_col_pallas(x, m, target_tile_bytes)


class MaskLayer:
    """JAX port of Mask_Layer (forward only; mask is non-trainable)."""
    # TODO(synk): apply_mask's custom backward (grad_weight = mask * grad_output)
    # is not ported; wrap the forward in jax.custom_vjp if gradients are needed.

    def __init__(self, n_out, is_conv=True):
        self.n_out = n_out
        self.is_conv = is_conv
        self.mask_shape = (1, n_out, 1, 1) if is_conv else (1, n_out)
        # __init__ initializes the mask to all ones (deterministic).
        self.mask = jnp.ones(self.mask_shape, dtype=jnp.float32)
        self.pruning_rate = 0.0

    def set_mask(self, mask):
        mask = jnp.asarray(mask, dtype=jnp.float32).reshape(self.mask_shape)
        self.pruning_rate = float(1.0 - jnp.mean(mask))
        self.mask = mask

    def __call__(self, x):
        # NOTE: in a full model, prefer fusing this multiply into the producing
        # conv/matmul epilogue (or let XLA fuse it); a standalone kernel always
        # pays a full read+write of the activation tensor.
        if self.is_conv:
            return mask_layer_forward_conv(x, self.mask)
        return mask_layer_forward_dense(x, self.mask)


if __name__ == "__main__":
    key = jax.random.PRNGKey(0)
    k1, k2, k3, k4 = jax.random.split(key, 4)

    # --- conv path, lane-aligned HW (16x16 = 256): 3-D resident-mask kernel ---
    N, C, H, W = 2, 4, 16, 16
    x = jax.random.normal(k1, (N, C, H, W), dtype=jnp.float32)
    layer = MaskLayer(n_out=C, is_conv=True)

    out_ones = jax.block_until_ready(
        mask_layer_forward_conv(x, layer.mask, force_pallas=True))
    assert jnp.allclose(out_ones, x), "all-ones mask should be identity"

    pruned = jnp.array([1.0, 0.0, 1.0, 0.0], dtype=jnp.float32)
    layer.set_mask(pruned.reshape(1, C, 1, 1))
    ref = x * pruned.reshape(1, C, 1, 1)
    out_pruned = jax.block_until_ready(
        mask_layer_forward_conv(x, layer.mask, force_pallas=True))
    assert jnp.allclose(out_pruned, ref), "pruned conv mask mismatch (pallas)"

    # Layer __call__ on a tiny tensor exercises the plain-JAX fallback path.
    out_layer = jax.block_until_ready(layer(x))
    assert jnp.allclose(out_layer, ref), "pruned conv mask mismatch (fallback)"

    # --- conv path, multi-block grid (forced tiny tile target) ---
    x_mb = jax.random.normal(k2, (2, 8, 16, 16), dtype=jnp.float32)
    m_mb = (jnp.arange(8) % 2).astype(jnp.float32).reshape(1, 8, 1, 1)
    out_mb = jax.block_until_ready(
        mask_layer_forward_conv(x_mb, m_mb, force_pallas=True,
                                target_tile_bytes=4096))
    assert jnp.allclose(out_mb, x_mb * m_mb), "multi-block conv mismatch"

    # --- conv path, HW not a multiple of 128 (14x14): flattened lane-dense ---
    x_nn = jax.random.normal(k3, (2, 8, 14, 14), dtype=jnp.float32)
    m_nn = jnp.array([1, 0, 1, 1, 0, 1, 0, 1], dtype=jnp.float32).reshape(1, 8, 1, 1)
    out_nn = jax.block_until_ready(
        mask_layer_forward_conv(x_nn, m_nn, force_pallas=True,
                                target_tile_bytes=4096))
    assert jnp.allclose(out_nn, x_nn * m_nn), "non-aligned-HW conv mismatch"

    # --- dense path: (N, F) * (1, F) ---
    Nd, Fd = 8, 32
    xd = jax.random.normal(k4, (Nd, Fd), dtype=jnp.float32)
    dlayer = MaskLayer(n_out=Fd, is_conv=False)
    fmask = (jnp.arange(Fd) % 2).astype(jnp.float32).reshape(1, Fd)
    dlayer.set_mask(fmask)
    out_d = jax.block_until_ready(
        mask_layer_forward_dense(xd, dlayer.mask, force_pallas=True))
    assert jnp.allclose(out_d, xd * fmask), "pruned dense mask mismatch (pallas)"
    out_d_fb = jax.block_until_ready(dlayer(xd))
    assert jnp.allclose(out_d_fb, xd * fmask), "pruned dense mask mismatch (fallback)"

    # --- dense path, multi-block grid (forced tiny tile target) ---
    xd2 = jax.random.normal(k2, (16, 256), dtype=jnp.float32)
    md2 = (jnp.arange(256) % 3 == 0).astype(jnp.float32).reshape(1, 256)
    out_d2 = jax.block_until_ready(
        mask_layer_forward_dense(xd2, md2, force_pallas=True,
                                 target_tile_bytes=4096))
    assert jnp.allclose(out_d2, xd2 * md2), "multi-block dense mismatch"

    print("KERNEL_OK")
</pallas_src>

<mosaic_0001>
module attributes {stable_mosaic.version = 11 : i64} {
  func.func @_broadcast_mul_kernel(%arg0: i32, %arg1: i32, %arg2: memref<2x4x256xf32, #tpu.memory_space<vmem>>, %arg3: memref<1x4x1xf32, #tpu.memory_space<vmem>>, %arg4: memref<2x4x256xf32, #tpu.memory_space<vmem>>) attributes {dimension_semantics = [#tpu.dimension_semantics<parallel>, #tpu.dimension_semantics<parallel>], iteration_bounds = array<i64: 1, 1>, scalar_prefetch = 0 : i64, scratch_operands = 0 : i64, tpu.core_type = #tpu.core_type<tc>, window_params = [{transform_indices = @transform_0, window_bounds = array<i64: 2, 4, 256>}, {pipeline_mode = #tpu.pipeline_mode<synchronous>, transform_indices = @transform_1, window_bounds = array<i64: 1, 4, 1>}, {transform_indices = @transform_2, window_bounds = array<i64: 2, 4, 256>}]} {
    %c0 = arith.constant 0 : index
    %c0_0 = arith.constant 0 : index
    %c0_1 = arith.constant 0 : index
    %0 = vector.load %arg2[%c0, %c0_0, %c0_1] : memref<2x4x256xf32, #tpu.memory_space<vmem>>, vector<2x4x256xf32>
    %c0_2 = arith.constant 0 : index
    %c0_3 = arith.constant 0 : index
    %c0_4 = arith.constant 0 : index
    %1 = vector.load %arg3[%c0_2, %c0_3, %c0_4] : memref<1x4x1xf32, #tpu.memory_space<vmem>>, vector<1x4x1xf32>
    %2 = vector.broadcast %1 : vector<1x4x1xf32> to vector<2x4x256xf32>
    %3 = arith.mulf %0, %2 : vector<2x4x256xf32>
    %c0_5 = arith.constant 0 : index
    %c0_6 = arith.constant 0 : index
    %c0_7 = arith.constant 0 : index
    %4 = vector.load %arg4[%c0_5, %c0_6, %c0_7] : memref<2x4x256xf32, #tpu.memory_space<vmem>>, vector<2x4x256xf32>
    tpu.vector_store %arg4[%c0_5, %c0_6, %c0_7], %3 {strides = array<i32>} : memref<2x4x256xf32, #tpu.memory_space<vmem>>, vector<2x4x256xf32>,
    return
  }
  func.func @transform_0(%arg0: i32, %arg1: i32) -> (i32, i32, i32) {
    %c0_i32 = arith.constant 0 : i32
    %c0_i32_0 = arith.constant 0 : i32
    return %arg0, %c0_i32, %arg1 : i32, i32, i32
  }
  func.func @transform_1(%arg0: i32, %arg1: i32) -> (i32, i32, i32) {
    %c0_i32 = arith.constant 0 : i32
    %c0_i32_0 = arith.constant 0 : i32
    %c0_i32_1 = arith.constant 0 : i32
    %c0_i32_2 = arith.constant 0 : i32
    return %c0_i32, %c0_i32_0, %c0_i32_1 : i32, i32, i32
  }
  func.func @transform_2(%arg0: i32, %arg1: i32) -> (i32, i32, i32) {
    %c0_i32 = arith.constant 0 : i32
    %c0_i32_0 = arith.constant 0 : i32
    return %arg0, %c0_i32, %arg1 : i32, i32, i32
  }
}

</mosaic_0001>

<llo_original>
// kernel: mask_layer_forward_conv.1
$region0: #{mask_layer_forward_conv.1}
  #allocation0 [shape = 'u32[]', space=smem, size = 0x4, offset = 0x4, fixed_abs, tag = 'smem constant byte address 0x4 - core index']
  #allocation1 [shape = 'u32[72,128]{1,0:T(1,128)}', space=vmem, size = 0x9000, scoped, tag = 'internal scratch']
  %s0 = inlined_call_operand.vmem [shape: f32[2,4,256], index: 0, kind: input, shape index: {}]
  %s1 = inlined_call_operand.vmem [shape: f32[1,4,1], index: 1, kind: input, shape index: {}]
  %s2 = inlined_call_operand.vmem [shape: f32[2,4,256], index: 2, kind: output, shape index: {}]
  %s3 = sld [smem:[#allocation0]]
  $region18: #{mask_layer_forward_conv.1} parent=0
    _
  %s5 = ssub.s32 1, %s3
  %s6 = scalar_select 0, %s5, %s3
  // Predicated region
  $region2: #{mask_layer_forward_conv.1} parent=0 // pred_check
    _
  $region3: #{mask_layer_forward_conv.1} parent=0 // pred_check_branch
    %8 = sbr.rel (0) target = $region5
  $region4: #{mask_layer_forward_conv.1} parent=0 // pred_region
    _
  $region5: #{mask_layer_forward_conv.1} parent=0 // pred_fallthru
    _
  // Predicated region
  $region6: #{mask_layer_forward_conv.1} parent=0 // pred_check
    _
  $region7: #{mask_layer_forward_conv.1} parent=0 // pred_check_branch
    %10 = sbr.rel (0) target = $region9
  $region8: #{mask_layer_forward_conv.1} parent=0 // pred_region
    _
  $region9: #{mask_layer_forward_conv.1} parent=0 // pred_fallthru
    _
  %v11 = vld [vmem:[%s0] sm:$0xff]
  %v12 = vld [vmem:[%s0 + $0x8] sm:$0xff]
  %v13 = vld [vmem:[%s1] sm:$0xf]
  %15 = vset.pattern.permute.xlu0 0
  %16 = vperm.xlu0 %15, %v13
  %v17 = vpop.permute.xlu0 %16
  %v19 = vunpack.c.l.s4 839922192
  %v20 = vunpack.c.0.s8 %v19
  %v21 = vperm.slane %v17, %v20
  %v23 = vmul.f32 %v11, %v21
  %v24 = vmul.f32 %v12, %v21
  %25 = vst [vmem:[%s2] sm:$0xff] %v23
  %26 = vst [vmem:[%s2 + $0x8] sm:$0xff] %v24
  // Predicated region
  $region10: #{mask_layer_forward_conv.1} parent=0 // pred_check
    _
  $region11: #{mask_layer_forward_conv.1} parent=0 // pred_check_branch
    %28 = sbr.rel (0) target = $region13
  $region12: #{mask_layer_forward_conv.1} parent=0 // pred_region
    _
  $region13: #{mask_layer_forward_conv.1} parent=0 // pred_fallthru
    _
  // Predicated region
  $region14: #{mask_layer_forward_conv.1} parent=0 // pred_check
    _
  $region15: #{mask_layer_forward_conv.1} parent=0 // pred_check_branch
    %30 = sbr.rel (0) target = $region17
  $region16: #{mask_layer_forward_conv.1} parent=0 // pred_region
    _
  $region17: #{mask_layer_forward_conv.1} parent=0 // pred_fallthru
    _

</llo_original>
